<compile_context>
chip_gen: v7x
topology: tpu7x:2x2x1
jax: 0.10.0
libtpu: 0.0.40
codegen_flags: <defaults>
</compile_context>

<pallas_src>
import jax
import jax.numpy as jnp
import numpy as np
from jax.experimental import pallas as pl
from jax.experimental.pallas import tpu as pltpu

STATE_DIM = 4        # state_dim (>= 2 required: W = x[:,0]^2 + grad_V[:,1])
ACTION_DIM = 2       # action_dim
HIDDEN = 32          # net_arch = [32, 32]
EPS_LYAP = 0.1       # regulariser of the synthetic LyapunovFunction

# bank order (hidden columns): [f_hat, alpha_hat, lyap-phi, g_0, g_1, beta_0, beta_1]
N_BANKS = 3 + 2 * ACTION_DIM
D_OUTS = ([STATE_DIM, ACTION_DIM, STATE_DIM]
          + [STATE_DIM] * ACTION_DIM + [ACTION_DIM] * ACTION_DIM)
H_ALL = N_BANKS * HIDDEN          # 224
H_PAD = 256                       # zero-padded hidden width (native 256-wide MXU)
LYAP_COL = 2 * HIDDEN             # hidden-column offset of the lyapunov bank

# layer-3 packed output column layout (cols 0:14 == output-slab cols 0:14)
Y_G = 0                                           # g_0 | g_1      (m*n = 8)
Y_A = Y_G + ACTION_DIM * STATE_DIM                # alpha          (m   = 2)
Y_B = Y_A + ACTION_DIM                            # beta_0 | beta_1(m*m = 4)
Y_F = Y_B + ACTION_DIM * ACTION_DIM               # f_hat          (n   = 4)
Y_D = Y_F + STATE_DIM                             # lyapunov phi   (n   = 4)
D3 = Y_D + STATE_DIM                              # 22
# per-bank layer-3 column offsets, bank order as above
Y_COL = [Y_F, Y_A, Y_D, Y_G, Y_G + STATE_DIM, Y_B, Y_B + ACTION_DIM]

# (tB, 128) lane-dense output slab layout
OF_F = Y_F                        # 14..17 : f
OF_V = OF_F + STATE_DIM           # 18     : V
OF_H = OF_V + 1                   # 19..20 : h
OUT_USED = OF_H + ACTION_DIM      # 21
OUT_LANES = 128

TILE_B = 8                        # f32 sublane multiple


# --------------------------------- kernel ------------------------------------

def passification_kernel(x_ref, w1_ref, w2_ref, w3_ref, b_ref, lyap_ref, out_ref):
    n, m, H = STATE_DIM, ACTION_DIM, HIDDEN
    x = x_ref[...]                                   # (tB, n) f32
    tB = x.shape[0]

    b_all = b_ref[...]                               # (4, H_PAD) f32
    b1 = b_all[0:1, :]
    b2 = b_all[1:2, :]
    b3 = b_all[2:3, 0:D3]                            # zero-input offsets folded
    gconst = b_all[3:4, 0:H]                         # 2*(b3_l - phi(0)) @ W3_l^T

    # ---- fused forward of all 7 MLP banks: three wide bf16 MXU matmuls ----
    z1 = jnp.dot(x.astype(jnp.bfloat16), w1_ref[...],
                 preferred_element_type=jnp.float32) + b1            # (tB, 256)
    a1 = jnp.maximum(z1, 0.0)
    z2 = jnp.dot(a1.astype(jnp.bfloat16), w2_ref[...],
                 preferred_element_type=jnp.float32) + b2            # (tB, 256)
    a2 = jnp.maximum(z2, 0.0)
    y = jnp.dot(a2.astype(jnp.bfloat16), w3_ref[...],
                preferred_element_type=jnp.float32) + b3             # (tB, 22)

    f0 = y[:, Y_F:Y_F + n]                           # f_hat(x) - f_hat(0)
    alpha = y[:, Y_A:Y_A + m]                        # alpha_hat(x) - alpha_hat(0)
    d = y[:, Y_D:Y_D + n]                            # phi(x) - phi(0)
    g_cols = [y[:, Y_G + i * n: Y_G + (i + 1) * n] for i in range(m)]
    beta_cols = [y[:, Y_B + j * m: Y_B + (j + 1) * m] for j in range(m)]

    # ---- synthetic Lyapunov value + analytic grad_V (manual backprop, f32) ----
    V = (jnp.sum(d * d, axis=1, keepdims=True)
         + EPS_LYAP * jnp.sum(x * x, axis=1, keepdims=True))          # (tB, 1)

    z1_l = z1[:, LYAP_COL:LYAP_COL + H]
    z2_l = z2[:, LYAP_COL:LYAP_COL + H]
    a2_l = a2[:, LYAP_COL:LYAP_COL + H]
    lyap = lyap_ref[...]                             # (3H, H) f32
    m3 = lyap[0:H, :]                                # 2 * W3_l @ W3_l^T
    w2t = lyap[H:2 * H, :]                           # W2_l^T
    w1t = lyap[2 * H:3 * H, 0:n]                     # W1_l^T

    # gh2 = 2*d @ W3_l^T, folded so it depends on a2_l (K=32) instead of y (K=4)
    gh2 = jnp.dot(a2_l, m3, preferred_element_type=jnp.float32) + gconst
    gz2 = jnp.where(z2_l > 0.0, gh2, 0.0)
    gh1 = jnp.dot(gz2, w2t, preferred_element_type=jnp.float32)
    gz1 = jnp.where(z1_l > 0.0, gh1, 0.0)
    grad_V = (jnp.dot(gz1, w1t, preferred_element_type=jnp.float32)
              + (2.0 * EPS_LYAP) * x)                                 # (tB, n)

    # ---- criterion and stabilized f ----
    g_alpha = g_cols[0] * alpha[:, 0:1]
    for i in range(1, m):
        g_alpha = g_alpha + g_cols[i] * alpha[:, i:i + 1]
    Wterm = x[:, 0:1] * x[:, 0:1] + grad_V[:, 1:2]                    # (tB, 1)
    num = jnp.sum(grad_V * (f0 + g_alpha), axis=1, keepdims=True) + Wterm
    den = jnp.sum(grad_V * grad_V, axis=1, keepdims=True) + 1e-4
    criterion = jnp.maximum(num * pl.reciprocal(den, approx=True), 0.0)
    f = f0 - criterion * grad_V                                       # (tB, n)

    # ---- h = grad_V^T @ (g @ beta): h[:, j] = sum_i (grad_V . g_i) * beta_j[:, i]
    c = [jnp.sum(grad_V * g_cols[i], axis=1, keepdims=True) for i in range(m)]
    h_cols = []
    for j in range(m):
        hj = c[0] * beta_cols[j][:, 0:1]
        for i in range(1, m):
            hj = hj + c[i] * beta_cols[j][:, i:i + 1]
        h_cols.append(hj)
    h = jnp.concatenate(h_cols, axis=1)                               # (tB, m)

    # ---- single lane-dense (tB, 128) store; cols 0:14 are a straight copy of y
    pad = jnp.zeros((tB, OUT_LANES - OUT_USED), jnp.float32)
    out = jnp.concatenate([y[:, 0:Y_F], f, V, h, pad], axis=1)
    out_ref[...] = out


# ----------------------- shared reference-precision MLP ----------------------

_HP = jax.lax.Precision.HIGHEST


def _q(t):
    # bf16 value-rounding with a straight-through gradient: emulates the bf16
    # MXU operand truncation of the kernel while keeping autodiff in f32.
    r = t.astype(jnp.bfloat16).astype(jnp.float32)
    return t + jax.lax.stop_gradient(r - t)


def mlp_ref(v, p):
    W1, b1, W2, b2, W3, b3 = p
    h1 = jnp.maximum(jnp.dot(_q(v), W1, precision=_HP) + b1, 0.0)
    h2 = jnp.maximum(jnp.dot(_q(h1), W2, precision=_HP) + b2, 0.0)
    return jnp.dot(_q(h2), W3, precision=_HP) + b3


# --------------------------------- packing -----------------------------------

def quantize_banks(banks):
    """bf16 storage dtype for all MLP parameters (perf: halves weight DMA)."""
    return [tuple(p.astype(jnp.bfloat16).astype(jnp.float32) for p in bank)
            for bank in banks]


def pack_params(banks_q):
    """Pack the 7 (bf16-valued) MLP banks into 5 contiguous slabs."""
    n, m, H = STATE_DIM, ACTION_DIM, HIDDEN
    zero = jnp.zeros((1, n), jnp.float32)

    W1c = jnp.zeros((n, H_PAD), jnp.float32)
    W2bd = jnp.zeros((H_PAD, H_PAD), jnp.float32)
    W3p = jnp.zeros((H_PAD, D3), jnp.float32)
    b_all = jnp.zeros((4, H_PAD), jnp.float32)
    for i, p in enumerate(banks_q):
        c0 = i * H
        W1c = W1c.at[:, c0:c0 + H].set(p[0])
        W2bd = W2bd.at[c0:c0 + H, c0:c0 + H].set(p[2])
        W3p = W3p.at[c0:c0 + H, Y_COL[i]:Y_COL[i] + D_OUTS[i]].set(p[4])
        b_all = b_all.at[0, c0:c0 + H].set(p[1][0])
        b_all = b_all.at[1, c0:c0 + H].set(p[3][0])
        b3i = p[5]
        if i < 3:  # f_hat, alpha_hat, lyapunov phi: fold zero-input offset into bias
            b3i = b3i - mlp_ref(zero, p)
        b_all = b_all.at[2, Y_COL[i]:Y_COL[i] + D_OUTS[i]].set(b3i[0])

    # Lyapunov backward slab (tiny, kept f32): [2*W3l@W3l^T ; W2l^T ; W1l^T padded]
    lW1, _, lW2, _, lW3, lb3 = banks_q[2]
    m3 = 2.0 * jnp.dot(lW3, lW3.T, precision=_HP)                     # (H, H)
    w1t = jnp.zeros((H, H), jnp.float32).at[:, 0:n].set(lW1.T)
    lyap = jnp.concatenate([m3, lW2.T, w1t], axis=0)                  # (3H, H)
    # folded constant of the grad chain: 2*(b3_l - phi(0)) @ W3_l^T
    cl = lb3 - mlp_ref(zero, banks_q[2])
    b_all = b_all.at[3, 0:H].set((2.0 * jnp.dot(cl, lW3.T, precision=_HP))[0])

    return (W1c.astype(jnp.bfloat16), W2bd.astype(jnp.bfloat16),
            W3p.astype(jnp.bfloat16), b_all, lyap)


# --------------------------------- wrapper -----------------------------------

def passification_forward(x, packed):
    """Returns (f, g, alpha, V, h, beta) with PyTorch shapes."""
    B = x.shape[0]
    n, m = STATE_DIM, ACTION_DIM
    W1c, W2bd, W3p, b_all, lyap = packed
    assert B % TILE_B == 0
    grid = (B // TILE_B,)

    def const(shape):
        # constant block index -> weight slab is DMA'd once and stays resident
        return pl.BlockSpec(shape, lambda i: (0, 0))

    out = pl.pallas_call(
        passification_kernel,
        out_shape=jax.ShapeDtypeStruct((B, OUT_LANES), jnp.float32),
        grid=grid,
        in_specs=[
            pl.BlockSpec((TILE_B, n), lambda i: (i, 0)),   # x tiles over batch
            const(W1c.shape),
            const(W2bd.shape),
            const(W3p.shape),
            const(b_all.shape),
            const(lyap.shape),
        ],
        out_specs=pl.BlockSpec((TILE_B, OUT_LANES), lambda i: (i, 0)),
        compiler_params=pltpu.CompilerParams(
            dimension_semantics=("parallel",)),            # shard batch over v7x's 2 TCs
    )(x, W1c, W2bd, W3p, b_all, lyap)

    f = out[:, OF_F:OF_F + n][..., None]                                        # (B, n, 1)
    g = jnp.transpose(out[:, Y_G:Y_G + m * n].reshape(B, m, n), (0, 2, 1))      # (B, n, m)
    alpha = out[:, Y_A:Y_A + m][..., None]                                      # (B, m, 1)
    V = out[:, OF_V:OF_V + 1]                                                   # (B, 1)
    h = out[:, OF_H:OF_H + m][:, None, :]                                       # (B, 1, m)
    beta = jnp.transpose(out[:, Y_B:Y_B + m * m].reshape(B, m, m), (0, 2, 1))   # (B, m, m)
    return f, g, alpha, V, h, beta


# ----------------------------- pure-JAX reference ----------------------------

def reference_forward(x, banks_q):
    n, m = STATE_DIM, ACTION_DIM
    zero = jnp.zeros((1, n), jnp.float32)

    def lyap_V(v):
        dphi = mlp_ref(v, banks_q[2]) - mlp_ref(zero, banks_q[2])
        return (jnp.sum(dphi * dphi, axis=1, keepdims=True)
                + EPS_LYAP * jnp.sum(v * v, axis=1, keepdims=True))

    f0 = (mlp_ref(x, banks_q[0]) - mlp_ref(zero, banks_q[0]))[..., None]        # (B, n, 1)
    alpha = (mlp_ref(x, banks_q[1]) - mlp_ref(zero, banks_q[1]))[..., None]     # (B, m, 1)
    g = jnp.stack([mlp_ref(x, banks_q[3 + i]) for i in range(m)], axis=2)       # (B, n, m)
    beta = jnp.stack([mlp_ref(x, banks_q[3 + m + i]) for i in range(m)], axis=2)  # (B, m, m)
    V = lyap_V(x)
    grad_V = jax.grad(lambda v: lyap_V(v).sum())(x)[..., None]                  # (B, n, 1)
    Wt = (x[:, 0] ** 2).reshape(-1, 1, 1) + grad_V[:, 1, :].reshape(-1, 1, 1)
    gT = jnp.transpose(grad_V, (0, 2, 1))                                       # (B, 1, n)
    h = gT @ (g @ beta)                                                         # (B, 1, m)
    crit = jax.nn.relu((gT @ (f0 + g @ alpha) + Wt)
                       / (jnp.sum(grad_V ** 2, axis=1, keepdims=True) + 1e-4))
    f = f0 - crit * grad_V
    return f, g, alpha, V, h, beta


# ----------------------------- deterministic init ----------------------------

def init_mlp(key, d_in, d_h, d_out):
    k = jax.random.split(key, 6)
    W1 = jax.random.normal(k[0], (d_in, d_h), jnp.float32) / jnp.sqrt(d_in)
    b1 = jax.random.normal(k[1], (1, d_h), jnp.float32) * 0.1
    W2 = jax.random.normal(k[2], (d_h, d_h), jnp.float32) / jnp.sqrt(d_h)
    b2 = jax.random.normal(k[3], (1, d_h), jnp.float32) * 0.1
    W3 = jax.random.normal(k[4], (d_h, d_out), jnp.float32) / jnp.sqrt(d_h)
    b3 = jax.random.normal(k[5], (1, d_out), jnp.float32) * 0.1
    return (W1, b1, W2, b2, W3, b3)


if __name__ == "__main__":
    n, m, H = STATE_DIM, ACTION_DIM, HIDDEN
    BATCH = 16                       # 2 batch tiles of 8 -> exercises the grid
    key = jax.random.PRNGKey(0)
    kx, *kbank = jax.random.split(key, 1 + N_BANKS)

    x = jax.random.normal(kx, (BATCH, n), jnp.float32)
    banks = [init_mlp(kbank[i], n, H, D_OUTS[i]) for i in range(N_BANKS)]
    banks_q = quantize_banks(banks)          # bf16 weight storage (per perf review)
    packed = pack_params(banks_q)

    outs = passification_forward(x, packed)
    jax.block_until_ready(outs)

    f, g, alpha, V, h, beta = outs
    assert f.shape == (BATCH, n, 1)
    assert g.shape == (BATCH, n, m)
    assert alpha.shape == (BATCH, m, 1)
    assert V.shape == (BATCH, 1)
    assert h.shape == (BATCH, 1, m)
    assert beta.shape == (BATCH, m, m)

    # Reference uses the same bf16-stored weights; tolerance covers the bf16 MXU
    # operand truncation / approx-reciprocal vs the f32 HIGHEST reference math.
    ref = reference_forward(x, banks_q)
    for got, want in zip(outs, ref):
        np.testing.assert_allclose(np.asarray(got), np.asarray(want),
                                   rtol=3e-2, atol=3e-2)

    print("KERNEL_OK")
</pallas_src>

<mosaic_0001>
module attributes {stable_mosaic.version = 11 : i64} {
  func.func @passification_kernel(%arg0: i32, %arg1: memref<8x4xf32, #tpu.memory_space<vmem>>, %arg2: memref<4x256xbf16, #tpu.memory_space<vmem>>, %arg3: memref<256x256xbf16, #tpu.memory_space<vmem>>, %arg4: memref<256x22xbf16, #tpu.memory_space<vmem>>, %arg5: memref<4x256xf32, #tpu.memory_space<vmem>>, %arg6: memref<96x32xf32, #tpu.memory_space<vmem>>, %arg7: memref<8x128xf32, #tpu.memory_space<vmem>>) attributes {dimension_semantics = [#tpu.dimension_semantics<parallel>], iteration_bounds = array<i64: 2>, scalar_prefetch = 0 : i64, scratch_operands = 0 : i64, tpu.core_type = #tpu.core_type<tc>, window_params = [{transform_indices = @transform_0, window_bounds = array<i64: 8, 4>}, {pipeline_mode = #tpu.pipeline_mode<synchronous>, transform_indices = @transform_1, window_bounds = array<i64: 4, 256>}, {pipeline_mode = #tpu.pipeline_mode<synchronous>, transform_indices = @transform_2, window_bounds = array<i64: 256, 256>}, {pipeline_mode = #tpu.pipeline_mode<synchronous>, transform_indices = @transform_3, window_bounds = array<i64: 256, 22>}, {pipeline_mode = #tpu.pipeline_mode<synchronous>, transform_indices = @transform_4, window_bounds = array<i64: 4, 256>}, {pipeline_mode = #tpu.pipeline_mode<synchronous>, transform_indices = @transform_5, window_bounds = array<i64: 96, 32>}, {transform_indices = @transform_6, window_bounds = array<i64: 8, 128>}]} {
    %c0 = arith.constant 0 : index
    %c0_0 = arith.constant 0 : index
    %0 = vector.load %arg1[%c0, %c0_0] : memref<8x4xf32, #tpu.memory_space<vmem>>, vector<8x4xf32>
    %c0_1 = arith.constant 0 : index
    %c0_2 = arith.constant 0 : index
    %1 = vector.load %arg5[%c0_1, %c0_2] : memref<4x256xf32, #tpu.memory_space<vmem>>, vector<4x256xf32>
    %2 = vector.extract_strided_slice %1 {offsets = [0, 0], sizes = [1, 256], strides = [1, 1]} : vector<4x256xf32> to vector<1x256xf32>
    %3 = vector.extract_strided_slice %1 {offsets = [1, 0], sizes = [1, 256], strides = [1, 1]} : vector<4x256xf32> to vector<1x256xf32>
    %4 = vector.extract_strided_slice %1 {offsets = [2, 0], sizes = [1, 22], strides = [1, 1]} : vector<4x256xf32> to vector<1x22xf32>
    %5 = vector.extract_strided_slice %1 {offsets = [3, 0], sizes = [1, 32], strides = [1, 1]} : vector<4x256xf32> to vector<1x32xf32>
    %6 = arith.truncf %0 : vector<8x4xf32> to vector<8x4xbf16>
    %c0_3 = arith.constant 0 : index
    %c0_4 = arith.constant 0 : index
    %7 = vector.load %arg2[%c0_3, %c0_4] : memref<4x256xbf16, #tpu.memory_space<vmem>>, vector<4x256xbf16>
    %cst = arith.constant dense<0.000000e+00> : vector<8x256xf32>
    %8 = tpu.matmul %6, %7, %cst {dimension_numbers = #tpu.dot_dimension_numbers<[1], [0], [0], [1], [0, 0, 1, 1], [], []>} : vector<8x4xbf16>, vector<4x256xbf16>, vector<8x256xf32> -> vector<8x256xf32>
    %9 = vector.broadcast %2 : vector<1x256xf32> to vector<8x256xf32>
    %10 = arith.addf %8, %9 : vector<8x256xf32>
    %cst_5 = arith.constant 0.000000e+00 : f32
    %11 = vector.broadcast %cst_5 : f32 to vector<8x256xf32>
    %12 = arith.maximumf %10, %11 : vector<8x256xf32>
    %13 = arith.truncf %12 : vector<8x256xf32> to vector<8x256xbf16>
    %c0_6 = arith.constant 0 : index
    %c0_7 = arith.constant 0 : index
    %14 = vector.load %arg3[%c0_6, %c0_7] : memref<256x256xbf16, #tpu.memory_space<vmem>>, vector<256x256xbf16>
    %cst_8 = arith.constant dense<0.000000e+00> : vector<8x256xf32>
    %15 = tpu.matmul %13, %14, %cst_8 {dimension_numbers = #tpu.dot_dimension_numbers<[1], [0], [0], [1], [0, 0, 1, 1], [], []>} : vector<8x256xbf16>, vector<256x256xbf16>, vector<8x256xf32> -> vector<8x256xf32>
    %16 = vector.broadcast %3 : vector<1x256xf32> to vector<8x256xf32>
    %17 = arith.addf %15, %16 : vector<8x256xf32>
    %cst_9 = arith.constant 0.000000e+00 : f32
    %18 = vector.broadcast %cst_9 : f32 to vector<8x256xf32>
    %19 = arith.maximumf %17, %18 : vector<8x256xf32>
    %20 = arith.truncf %19 : vector<8x256xf32> to vector<8x256xbf16>
    %c0_10 = arith.constant 0 : index
    %c0_11 = arith.constant 0 : index
    %21 = vector.load %arg4[%c0_10, %c0_11] : memref<256x22xbf16, #tpu.memory_space<vmem>>, vector<256x22xbf16>
    %cst_12 = arith.constant dense<0.000000e+00> : vector<8x22xf32>
    %22 = tpu.matmul %20, %21, %cst_12 {dimension_numbers = #tpu.dot_dimension_numbers<[1], [0], [0], [1], [0, 0, 1, 1], [], []>} : vector<8x256xbf16>, vector<256x22xbf16>, vector<8x22xf32> -> vector<8x22xf32>
    %23 = vector.broadcast %4 : vector<1x22xf32> to vector<8x22xf32>
    %24 = arith.addf %22, %23 : vector<8x22xf32>
    %25 = vector.extract_strided_slice %24 {offsets = [0, 14], sizes = [8, 4], strides = [1, 1]} : vector<8x22xf32> to vector<8x4xf32>
    %26 = vector.extract_strided_slice %24 {offsets = [0, 8], sizes = [8, 2], strides = [1, 1]} : vector<8x22xf32> to vector<8x2xf32>
    %27 = vector.extract_strided_slice %24 {offsets = [0, 18], sizes = [8, 4], strides = [1, 1]} : vector<8x22xf32> to vector<8x4xf32>
    %28 = vector.extract_strided_slice %24 {offsets = [0, 0], sizes = [8, 4], strides = [1, 1]} : vector<8x22xf32> to vector<8x4xf32>
    %29 = vector.extract_strided_slice %24 {offsets = [0, 4], sizes = [8, 4], strides = [1, 1]} : vector<8x22xf32> to vector<8x4xf32>
    %30 = vector.extract_strided_slice %24 {offsets = [0, 10], sizes = [8, 2], strides = [1, 1]} : vector<8x22xf32> to vector<8x2xf32>
    %31 = vector.extract_strided_slice %24 {offsets = [0, 12], sizes = [8, 2], strides = [1, 1]} : vector<8x22xf32> to vector<8x2xf32>
    %32 = arith.mulf %27, %27 : vector<8x4xf32>
    %cst_13 = arith.constant dense<0.000000e+00> : vector<8xf32>
    %33 = vector.multi_reduction <add>, %32, %cst_13 [1] : vector<8x4xf32> to vector<8xf32>
    %34 = vector.shape_cast %33 : vector<8xf32> to vector<8x1xf32>
    %35 = arith.mulf %0, %0 : vector<8x4xf32>
    %cst_14 = arith.constant dense<0.000000e+00> : vector<8xf32>
    %36 = vector.multi_reduction <add>, %35, %cst_14 [1] : vector<8x4xf32> to vector<8xf32>
    %37 = vector.shape_cast %36 : vector<8xf32> to vector<8x1xf32>
    %cst_15 = arith.constant 1.000000e-01 : f32
    %38 = vector.broadcast %cst_15 : f32 to vector<8x1xf32>
    %39 = arith.mulf %38, %37 : vector<8x1xf32>
    %40 = arith.addf %34, %39 : vector<8x1xf32>
    %41 = vector.extract_strided_slice %10 {offsets = [0, 64], sizes = [8, 32], strides = [1, 1]} : vector<8x256xf32> to vector<8x32xf32>
    %42 = vector.extract_strided_slice %17 {offsets = [0, 64], sizes = [8, 32], strides = [1, 1]} : vector<8x256xf32> to vector<8x32xf32>
    %43 = vector.extract_strided_slice %19 {offsets = [0, 64], sizes = [8, 32], strides = [1, 1]} : vector<8x256xf32> to vector<8x32xf32>
    %c0_16 = arith.constant 0 : index
    %c0_17 = arith.constant 0 : index
    %44 = vector.load %arg6[%c0_16, %c0_17] : memref<96x32xf32, #tpu.memory_space<vmem>>, vector<96x32xf32>
    %45 = vector.extract_strided_slice %44 {offsets = [0, 0], sizes = [32, 32], strides = [1, 1]} : vector<96x32xf32> to vector<32x32xf32>
    %46 = vector.extract_strided_slice %44 {offsets = [32, 0], sizes = [32, 32], strides = [1, 1]} : vector<96x32xf32> to vector<32x32xf32>
    %47 = vector.extract_strided_slice %44 {offsets = [64, 0], sizes = [32, 4], strides = [1, 1]} : vector<96x32xf32> to vector<32x4xf32>
    %cst_18 = arith.constant dense<0.000000e+00> : vector<8x32xf32>
    %48 = tpu.matmul %43, %45, %cst_18 {dimension_numbers = #tpu.dot_dimension_numbers<[1], [0], [0], [1], [0, 0, 1, 1], [], []>} : vector<8x32xf32>, vector<32x32xf32>, vector<8x32xf32> -> vector<8x32xf32>
    %49 = vector.broadcast %5 : vector<1x32xf32> to vector<8x32xf32>
    %50 = arith.addf %48, %49 : vector<8x32xf32>
    %cst_19 = arith.constant 0.000000e+00 : f32
    %51 = vector.broadcast %cst_19 : f32 to vector<8x32xf32>
    %52 = arith.cmpf ogt, %42, %51 : vector<8x32xf32>
    %cst_20 = arith.constant 0.000000e+00 : f32
    %53 = vector.broadcast %cst_20 : f32 to vector<8x32xf32>
    %54 = arith.select %52, %50, %53 : vector<8x32xi1>, vector<8x32xf32>
    %cst_21 = arith.constant dense<0.000000e+00> : vector<8x32xf32>
    %55 = tpu.matmul %54, %46, %cst_21 {dimension_numbers = #tpu.dot_dimension_numbers<[1], [0], [0], [1], [0, 0, 1, 1], [], []>} : vector<8x32xf32>, vector<32x32xf32>, vector<8x32xf32> -> vector<8x32xf32>
    %cst_22 = arith.constant 0.000000e+00 : f32
    %56 = vector.broadcast %cst_22 : f32 to vector<8x32xf32>
    %57 = arith.cmpf ogt, %41, %56 : vector<8x32xf32>
    %cst_23 = arith.constant 0.000000e+00 : f32
    %58 = vector.broadcast %cst_23 : f32 to vector<8x32xf32>
    %59 = arith.select %57, %55, %58 : vector<8x32xi1>, vector<8x32xf32>
    %cst_24 = arith.constant dense<0.000000e+00> : vector<8x4xf32>
    %60 = tpu.matmul %59, %47, %cst_24 {dimension_numbers = #tpu.dot_dimension_numbers<[1], [0], [0], [1], [0, 0, 1, 1], [], []>} : vector<8x32xf32>, vector<32x4xf32>, vector<8x4xf32> -> vector<8x4xf32>
    %cst_25 = arith.constant 2.000000e-01 : f32
    %61 = vector.broadcast %cst_25 : f32 to vector<8x4xf32>
    %62 = arith.mulf %61, %0 : vector<8x4xf32>
    %63 = arith.addf %60, %62 : vector<8x4xf32>
    %64 = vector.extract_strided_slice %26 {offsets = [0, 0], sizes = [8, 1], strides = [1, 1]} : vector<8x2xf32> to vector<8x1xf32>
    %65 = vector.broadcast %64 : vector<8x1xf32> to vector<8x4xf32>
    %66 = arith.mulf %28, %65 : vector<8x4xf32>
    %67 = vector.extract_strided_slice %26 {offsets = [0, 1], sizes = [8, 1], strides = [1, 1]} : vector<8x2xf32> to vector<8x1xf32>
    %68 = vector.broadcast %67 : vector<8x1xf32> to vector<8x4xf32>
    %69 = arith.mulf %29, %68 : vector<8x4xf32>
    %70 = arith.addf %66, %69 : vector<8x4xf32>
    %71 = vector.extract_strided_slice %0 {offsets = [0, 0], sizes = [8, 1], strides = [1, 1]} : vector<8x4xf32> to vector<8x1xf32>
    %72 = vector.extract_strided_slice %0 {offsets = [0, 0], sizes = [8, 1], strides = [1, 1]} : vector<8x4xf32> to vector<8x1xf32>
    %73 = arith.mulf %71, %72 : vector<8x1xf32>
    %74 = vector.extract_strided_slice %63 {offsets = [0, 1], sizes = [8, 1], strides = [1, 1]} : vector<8x4xf32> to vector<8x1xf32>
    %75 = arith.addf %73, %74 : vector<8x1xf32>
    %76 = arith.addf %25, %70 : vector<8x4xf32>
    %77 = arith.mulf %63, %76 : vector<8x4xf32>
    %cst_26 = arith.constant dense<0.000000e+00> : vector<8xf32>
    %78 = vector.multi_reduction <add>, %77, %cst_26 [1] : vector<8x4xf32> to vector<8xf32>
    %79 = vector.shape_cast %78 : vector<8xf32> to vector<8x1xf32>
    %80 = arith.addf %79, %75 : vector<8x1xf32>
    %81 = arith.mulf %63, %63 : vector<8x4xf32>
    %cst_27 = arith.constant dense<0.000000e+00> : vector<8xf32>
    %82 = vector.multi_reduction <add>, %81, %cst_27 [1] : vector<8x4xf32> to vector<8xf32>
    %83 = vector.shape_cast %82 : vector<8xf32> to vector<8x1xf32>
    %cst_28 = arith.constant 9.99999974E-5 : f32
    %84 = vector.broadcast %cst_28 : f32 to vector<8x1xf32>
    %85 = arith.addf %83, %84 : vector<8x1xf32>
    %86 = tpu.reciprocal %85 {approx = true} : vector<8x1xf32> -> vector<8x1xf32>
    %87 = arith.mulf %80, %86 : vector<8x1xf32>
    %cst_29 = arith.constant 0.000000e+00 : f32
    %88 = vector.broadcast %cst_29 : f32 to vector<8x1xf32>
    %89 = arith.maximumf %87, %88 : vector<8x1xf32>
    %90 = vector.broadcast %89 : vector<8x1xf32> to vector<8x4xf32>
    %91 = arith.mulf %90, %63 : vector<8x4xf32>
    %92 = arith.subf %25, %91 : vector<8x4xf32>
    %93 = arith.mulf %63, %28 : vector<8x4xf32>
    %cst_30 = arith.constant dense<0.000000e+00> : vector<8xf32>
    %94 = vector.multi_reduction <add>, %93, %cst_30 [1] : vector<8x4xf32> to vector<8xf32>
    %95 = vector.shape_cast %94 : vector<8xf32> to vector<8x1xf32>
    %96 = arith.mulf %63, %29 : vector<8x4xf32>
    %cst_31 = arith.constant dense<0.000000e+00> : vector<8xf32>
    %97 = vector.multi_reduction <add>, %96, %cst_31 [1] : vector<8x4xf32> to vector<8xf32>
    %98 = vector.shape_cast %97 : vector<8xf32> to vector<8x1xf32>
    %99 = vector.extract_strided_slice %30 {offsets = [0, 0], sizes = [8, 1], strides = [1, 1]} : vector<8x2xf32> to vector<8x1xf32>
    %100 = arith.mulf %95, %99 : vector<8x1xf32>
    %101 = vector.extract_strided_slice %30 {offsets = [0, 1], sizes = [8, 1], strides = [1, 1]} : vector<8x2xf32> to vector<8x1xf32>
    %102 = arith.mulf %98, %101 : vector<8x1xf32>
    %103 = arith.addf %100, %102 : vector<8x1xf32>
    %104 = vector.extract_strided_slice %31 {offsets = [0, 0], sizes = [8, 1], strides = [1, 1]} : vector<8x2xf32> to vector<8x1xf32>
    %105 = arith.mulf %95, %104 : vector<8x1xf32>
    %106 = vector.extract_strided_slice %31 {offsets = [0, 1], sizes = [8, 1], strides = [1, 1]} : vector<8x2xf32> to vector<8x1xf32>
    %107 = arith.mulf %98, %106 : vector<8x1xf32>
    %108 = arith.addf %105, %107 : vector<8x1xf32>
    %109 = tpu.concatenate %103, %108 in 1 : vector<8x1xf32>, vector<8x1xf32> -> vector<8x2xf32>
    %cst_32 = arith.constant 0.000000e+00 : f32
    %110 = vector.broadcast %cst_32 : f32 to vector<8x107xf32>
    %111 = vector.extract_strided_slice %24 {offsets = [0, 0], sizes = [8, 14], strides = [1, 1]} : vector<8x22xf32> to vector<8x14xf32>
    %112 = tpu.concatenate %111, %92, %40, %109, %110 in 1 : vector<8x14xf32>, vector<8x4xf32>, vector<8x1xf32>, vector<8x2xf32>, vector<8x107xf32> -> vector<8x128xf32>
    %c0_33 = arith.constant 0 : index
    %c0_34 = arith.constant 0 : index
    %113 = vector.load %arg7[%c0_33, %c0_34] : memref<8x128xf32, #tpu.memory_space<vmem>>, vector<8x128xf32>
    tpu.vector_store %arg7[%c0_33, %c0_34], %112 {strides = array<i32>} : memref<8x128xf32, #tpu.memory_space<vmem>>, vector<8x128xf32>,
    return
  }
  func.func @transform_0(%arg0: i32) -> (i32, i32) {
    %c0_i32 = arith.constant 0 : i32
    %c0_i32_0 = arith.constant 0 : i32
    return %arg0, %c0_i32 : i32, i32
  }
  func.func @transform_1(%arg0: i32) -> (i32, i32) {
    %c0_i32 = arith.constant 0 : i32
    %c0_i32_0 = arith.constant 0 : i32
    %c0_i32_1 = arith.constant 0 : i32
    return %c0_i32, %c0_i32_0 : i32, i32
  }
  func.func @transform_2(%arg0: i32) -> (i32, i32) {
    %c0_i32 = arith.constant 0 : i32
    %c0_i32_0 = arith.constant 0 : i32
    %c0_i32_1 = arith.constant 0 : i32
    return %c0_i32, %c0_i32_0 : i32, i32
  }
  func.func @transform_3(%arg0: i32) -> (i32, i32) {
    %c0_i32 = arith.constant 0 : i32
    %c0_i32_0 = arith.constant 0 : i32
    %c0_i32_1 = arith.constant 0 : i32
    return %c0_i32, %c0_i32_0 : i32, i32
  }
  func.func @transform_4(%arg0: i32) -> (i32, i32) {
    %c0_i32 = arith.constant 0 : i32
    %c0_i32_0 = arith.constant 0 : i32
    %c0_i32_1 = arith.constant 0 : i32
    return %c0_i32, %c0_i32_0 : i32, i32
  }
  func.func @transform_5(%arg0: i32) -> (i32, i32) {
    %c0_i32 = arith.constant 0 : i32
    %c0_i32_0 = arith.constant 0 : i32
    %c0_i32_1 = arith.constant 0 : i32
    return %c0_i32, %c0_i32_0 : i32, i32
  }
  func.func @transform_6(%arg0: i32) -> (i32, i32) {
    %c0_i32 = arith.constant 0 : i32
    %c0_i32_0 = arith.constant 0 : i32
    return %arg0, %c0_i32 : i32, i32
  }
}

</mosaic_0001>

<llo_original>
// kernel: tpu_custom_call.1
$region0: #{tpu_custom_call.1}
  #allocation0 [shape = 'u32[]', space=smem, size = 0x4, offset = 0x4, fixed_abs, tag = 'smem constant byte address 0x4 - core index']
  #allocation1 [shape = 'u32[144,128]{1,0:T(1,128)}', space=vmem, size = 0x12000, scoped, tag = 'internal scratch']
  %s0 = inlined_call_operand.vmem [shape: f32[16,4], index: 0, kind: input, shape index: {}]
  %s1 = inlined_call_operand.vmem [shape: bf16[4,256], index: 1, kind: input, shape index: {}]
  %s2 = inlined_call_operand.vmem [shape: bf16[256,256], index: 2, kind: input, shape index: {}]
  %s3 = inlined_call_operand.vmem [shape: bf16[256,22], index: 3, kind: input, shape index: {}]
  %s4 = inlined_call_operand.hbm [shape: f32[4,256], index: 4, kind: input, shape index: {}]
  %s5 = inlined_call_operand.vmem [shape: f32[96,32], index: 5, kind: input, shape index: {}]
  %s6 = inlined_call_operand.hbm [shape: f32[16,128], index: 6, kind: output, shape index: {}]
  %s7 = sld [smem:[#allocation0]]
  $region61: #{tpu_custom_call.1} parent=0
    _
  %s9 = ssub.s32 1, %s7
  %s10 = scalar_select 0, %s9, %s7
  $region1: #{tpu_custom_call.1} parent=0
    #allocation2 [shape = 'u8[4096]{0}', space=vmem, size = 0x1000, scoped, tag = 'input window, operand 4, single buffered']
    #allocation3 [shape = 's32[2]{0}', space=sflag, size = 0x8, scoped, tag = 'scoped memory for tpu_custom_call.1']
    #allocation4 [shape = 's32[2]{0}', space=sflag, size = 0x8, scoped, tag = 'scoped memory for tpu_custom_call.1']
    #allocation5 [shape = 'u8[8192]{0}', space=vmem, size = 0x2000, scoped, tag = 'output window, operand 0']
    %11 = vsyncpa [#allocation3], 0
    %12 = vsyncpa [#allocation4], 0
    %s13 = scalar_lea.sflag [#allocation4], 1
    %14 = vsyncpa %s13, 0
    loop: start=0, step=1, limit=4
    $region2: #{tpu_custom_call.1} parent=1 // loop_pre_header
      _
    $region3: #{tpu_custom_call.1} parent=1 // loop_header
      %s16 = sphi 0, %s20
      %p17 = scmp.ge.s32.totalorder %s16, 4
      %s26 = sphi 0, %s28
      %s29 = sphi 0, %s26
      %s30 = sphi 0, %s29
      %s46 = sphi 0, %s30
      %s50 = sphi 0, %s50
      %s52 = sphi 0, %s50
      %s53 = sphi 0, %s52
      %s67 = sphi 0, %s53
      %s71 = sphi 0, %s71
      %s73 = sphi 0, %s71
      %s74 = sphi 0, %s73
      %s88 = sphi 0, %s74
      %s92 = sphi 0, %s92
      %s94 = sphi 0, %s92
      %s95 = sphi 0, %s94
      %s109 = sphi 0, %s95
      %s113 = sphi 0, %s113
      %s115 = sphi 0, %s113
      %s116 = sphi 0, %s115
      %s130 = sphi 0, %s116
      %s134 = sphi 0, %s134
      %s136 = sphi 0, %s134
      %s137 = sphi 0, %s136
      %s151 = sphi 0, %s137
      %s157 = sphi 0, %s159
      %s160 = sphi 0, %s157
      %s161 = sphi 0, %s160
      %s177 = sphi 0, %s161
    $region4: #{tpu_custom_call.1} parent=1 // loop_header_branch
      %19 = sbr.rel (%p17) target = $region8
    $region5: #{tpu_custom_call.1} parent=1 // loop_body
      %s21 = ssub.s32 %s16, 1
      %s22 = ssub.s32 %s16, 2
      %s23 = sadd.s32 %s16, 1
      %s24 = ssub.s32 %s16, %s23
      %p25 = scmp.eq.s32.totalorder %s24, 0
      %s27 = sadd.s32 %s26, 1
      %s28 = scalar_select %p25, %s26, %s27
      %p31 = pneg %p25
      %p32 = scmp.eq.s32.totalorder %s16, 1
      %p33 = por %p31, %p32
      %p34 = scmp.ne.s32.totalorder %s26, %s29
      %p35 = scmp.eq.s32.totalorder %s16, 0
      %p36 = por %p34, %p35
      %p37 = scmp.ne.s32.totalorder %s26, %s29
      %p38 = scmp.eq.s32.totalorder %s21, 1
      %p39 = por %p37, %p38
      %p40 = scmp.ne.s32.totalorder %s29, %s30
      %p41 = scmp.eq.s32.totalorder %s21, 0
      %p42 = por %p40, %p41
      %p43 = scmp.ne.s32.totalorder %s29, %s30
      %p44 = scmp.eq.s32.totalorder %s22, 1
      %p45 = por %p43, %p44
      %p47 = scmp.ne.s32.totalorder %s30, %s46
      %p48 = scmp.eq.s32.totalorder %s22, 0
      %p49 = por %p47, %p48
      %s51 = sadd.s32 %s50, 1
      %p54 = scmp.eq.s32.totalorder %s16, 1
      %p55 = scmp.ne.s32.totalorder %s50, %s52
      %p56 = scmp.eq.s32.totalorder %s16, 0
      %p57 = por %p55, %p56
      %p58 = scmp.ne.s32.totalorder %s50, %s52
      %p59 = scmp.eq.s32.totalorder %s21, 1
      %p60 = por %p58, %p59
      %p61 = scmp.ne.s32.totalorder %s52, %s53
      %p62 = scmp.eq.s32.totalorder %s21, 0
      %p63 = por %p61, %p62
      %p64 = scmp.ne.s32.totalorder %s52, %s53
      %p65 = scmp.eq.s32.totalorder %s22, 1
      %p66 = por %p64, %p65
      %p68 = scmp.ne.s32.totalorder %s53, %s67
      %p69 = scmp.eq.s32.totalorder %s22, 0
      %p70 = por %p68, %p69
      %s72 = sadd.s32 %s71, 1
      %p75 = scmp.eq.s32.totalorder %s16, 1
      %p76 = scmp.ne.s32.totalorder %s71, %s73
      %p77 = scmp.eq.s32.totalorder %s16, 0
      %p78 = por %p76, %p77
      %p79 = scmp.ne.s32.totalorder %s71, %s73
      %p80 = scmp.eq.s32.totalorder %s21, 1
      %p81 = por %p79, %p80
      %p82 = scmp.ne.s32.totalorder %s73, %s74
      %p83 = scmp.eq.s32.totalorder %s21, 0
      %p84 = por %p82, %p83
      %p85 = scmp.ne.s32.totalorder %s73, %s74
      %p86 = scmp.eq.s32.totalorder %s22, 1
      %p87 = por %p85, %p86
      %p89 = scmp.ne.s32.totalorder %s74, %s88
      %p90 = scmp.eq.s32.totalorder %s22, 0
      %p91 = por %p89, %p90
      %s93 = sadd.s32 %s92, 1
      %p96 = scmp.eq.s32.totalorder %s16, 1
      %p97 = scmp.ne.s32.totalorder %s92, %s94
      %p98 = scmp.eq.s32.totalorder %s16, 0
      %p99 = por %p97, %p98
      %p100 = scmp.ne.s32.totalorder %s92, %s94
      %p101 = scmp.eq.s32.totalorder %s21, 1
      %p102 = por %p100, %p101
      %p103 = scmp.ne.s32.totalorder %s94, %s95
      %p104 = scmp.eq.s32.totalorder %s21, 0
      %p105 = por %p103, %p104
      %p106 = scmp.ne.s32.totalorder %s94, %s95
      %p107 = scmp.eq.s32.totalorder %s22, 1
      %p108 = por %p106, %p107
      %p110 = scmp.ne.s32.totalorder %s95, %s109
      %p111 = scmp.eq.s32.totalorder %s22, 0
      %p112 = por %p110, %p111
      %s114 = sadd.s32 %s113, 1
      %p117 = scmp.eq.s32.totalorder %s16, 1
      %p118 = scmp.ne.s32.totalorder %s113, %s115
      %p119 = scmp.eq.s32.totalorder %s16, 0
      %p120 = por %p118, %p119
      %p121 = scmp.ne.s32.totalorder %s113, %s115
      %p122 = scmp.eq.s32.totalorder %s21, 1
      %p123 = por %p121, %p122
      %p124 = scmp.ne.s32.totalorder %s115, %s116
      %p125 = scmp.eq.s32.totalorder %s21, 0
      %p126 = por %p124, %p125
      %p127 = scmp.ne.s32.totalorder %s115, %s116
      %p128 = scmp.eq.s32.totalorder %s22, 1
      %p129 = por %p127, %p128
      %p131 = scmp.ne.s32.totalorder %s116, %s130
      %p132 = scmp.eq.s32.totalorder %s22, 0
      %p133 = por %p131, %p132
      %s135 = sadd.s32 %s134, 1
      %p138 = scmp.eq.s32.totalorder %s16, 1
      %p139 = scmp.ne.s32.totalorder %s134, %s136
      %p140 = scmp.eq.s32.totalorder %s16, 0
      %p141 = por %p139, %p140
      %p142 = scmp.ne.s32.totalorder %s134, %s136
      %p143 = scmp.eq.s32.totalorder %s21, 1
      %p144 = por %p142, %p143
      %p145 = scmp.ne.s32.totalorder %s136, %s137
      %p146 = scmp.eq.s32.totalorder %s21, 0
      %p147 = por %p145, %p146
      %p148 = scmp.ne.s32.totalorder %s136, %s137
      %p149 = scmp.eq.s32.totalorder %s22, 1
      %p150 = por %p148, %p149
      %p152 = scmp.ne.s32.totalorder %s137, %s151
      %p153 = scmp.eq.s32.totalorder %s22, 0
      %p154 = por %p152, %p153
      %s155 = ssub.s32 %s16, %s23
      %p156 = scmp.eq.s32.totalorder %s155, 0
      %s158 = sadd.s32 %s157, 1
      %s159 = scalar_select %p156, %s157, %s158
      %p162 = pneg %p156
      %p163 = scmp.eq.s32.totalorder %s16, 1
      %p164 = por %p162, %p163
      %p165 = scmp.ne.s32.totalorder %s157, %s160
      %p166 = scmp.eq.s32.totalorder %s16, 0
      %p167 = por %p165, %p166
      %p168 = scmp.ne.s32.totalorder %s157, %s160
      %p169 = scmp.eq.s32.totalorder %s21, 1
      %p170 = por %p168, %p169
      %p171 = scmp.ne.s32.totalorder %s160, %s161
      %p172 = scmp.eq.s32.totalorder %s21, 0
      %p173 = por %p171, %p172
      %p174 = scmp.ne.s32.totalorder %s160, %s161
      %p175 = scmp.eq.s32.totalorder %s22, 1
      %p176 = por %p174, %p175
      %p178 = scmp.ne.s32.totalorder %s161, %s177
      %p179 = scmp.eq.s32.totalorder %s22, 0
      %p180 = por %p178, %p179
      %p181 = scmp.le.s32.totalorder 1, %s16
      %p182 = scmp.lt.s32.totalorder %s16, 3
      %p183 = pnand %p181, %p182
      %p184 = pneg %p183
      // Predicated region
      $region9: #{tpu_custom_call.1} parent=5 // pred_check
        _
      $region10: #{tpu_custom_call.1} parent=5 // pred_check_branch
        %186 = sbr.rel (%p183) target = $region12
      $region11: #{tpu_custom_call.1} parent=5 // pred_region
        %s187 = ssub.s32 %s16, 1
        // Predicated region
        $region13: #{tpu_custom_call.1} parent=11 // pred_check
          %p188 = pneg %p63
        $region14: #{tpu_custom_call.1} parent=11 // pred_check_branch
          %190 = sbr.rel (%p188) target = $region16
        $region15: #{tpu_custom_call.1} parent=11 // pred_region
          _
        $region16: #{tpu_custom_call.1} parent=11 // pred_fallthru
          _
        // Predicated region
        $region17: #{tpu_custom_call.1} parent=11 // pred_check
          %p191 = pneg %p84
        $region18: #{tpu_custom_call.1} parent=11 // pred_check_branch
          %193 = sbr.rel (%p191) target = $region20
        $region19: #{tpu_custom_call.1} parent=11 // pred_region
          _
        $region20: #{tpu_custom_call.1} parent=11 // pred_fallthru
          _
        // Predicated region
        $region21: #{tpu_custom_call.1} parent=11 // pred_check
          %p194 = pneg %p105
        $region22: #{tpu_custom_call.1} parent=11 // pred_check_branch
          %196 = sbr.rel (%p194) target = $region24
        $region23: #{tpu_custom_call.1} parent=11 // pred_region
          _
        $region24: #{tpu_custom_call.1} parent=11 // pred_fallthru
          _
        // Predicated region
        $region25: #{tpu_custom_call.1} parent=11 // pred_check
          %p197 = pneg %p126
        $region26: #{tpu_custom_call.1} parent=11 // pred_check_branch
          %199 = sbr.rel (%p197) target = $region28
        $region27: #{tpu_custom_call.1} parent=11 // pred_region
          %s201 = ssub.s32 128, 128
          %202 = vsyncadd [#allocation3], %s201
          %s204 = sshll.u32 [#allocation2], 4
          %s205 = int_to_ptr.vmem [resolvable:$true] %s204
          %207 = dma.hbm_to_vmem [thread:$0]  %s4, 128, %s205, [#allocation3]
        $region28: #{tpu_custom_call.1} parent=11 // pred_fallthru
          _
        // Predicated region
        $region29: #{tpu_custom_call.1} parent=11 // pred_check
          %p208 = pneg %p147
        $region30: #{tpu_custom_call.1} parent=11 // pred_check_branch
          %210 = sbr.rel (%p208) target = $region32
        $region31: #{tpu_custom_call.1} parent=11 // pred_region
          _
        $region32: #{tpu_custom_call.1} parent=11 // pred_fallthru
          _
      $region12: #{tpu_custom_call.1} parent=5 // pred_fallthru
        _
      %p211 = scmp.lt.s32.totalorder %s16, 2
      // Predicated region
      $region33: #{tpu_custom_call.1} parent=5 // pred_check
        %p212 = pneg %p211
      $region34: #{tpu_custom_call.1} parent=5 // pred_check_branch
        %214 = sbr.rel (%p212) target = $region36
      $region35: #{tpu_custom_call.1} parent=5 // pred_region
        // Predicated region
        $region37: #{tpu_custom_call.1} parent=35 // pred_check
          %p215 = pneg %p36
        $region38: #{tpu_custom_call.1} parent=35 // pred_check_branch
          %217 = sbr.rel (%p215) target = $region40
        $region39: #{tpu_custom_call.1} parent=35 // pred_region
          %p218 = scmp.lt.s32.totalorder %s16, 1
          %s219 = scalar_select %p218, %s16, 1
          %s220 = smul.addr %s219, 8
          %s221 = scalar_lea.vmem %s0, %s220
        $region40: #{tpu_custom_call.1} parent=35 // pred_fallthru
          _
      $region36: #{tpu_custom_call.1} parent=5 // pred_fallthru
        _
      %p222 = scmp.le.s32.totalorder 1, %s16
      %p223 = scmp.lt.s32.totalorder %s16, 3
      %p224 = pnand %p222, %p223
      %p225 = pneg %p224
      // Predicated region
      $region41: #{tpu_custom_call.1} parent=5 // pred_check
        _
      $region42: #{tpu_custom_call.1} parent=5 // pred_check_branch
        %227 = sbr.rel (%p224) target = $region44
      $region43: #{tpu_custom_call.1} parent=5 // pred_region
        %s228 = ssub.s32 %s16, 1
        // Predicated region
        $region45: #{tpu_custom_call.1} parent=43 // pred_check
          %p229 = pneg %p126
        $region46: #{tpu_custom_call.1} parent=43 // pred_check_branch
          %231 = sbr.rel (%p229) target = $region48
        $region47: #{tpu_custom_call.1} parent=43 // pred_region
          %232 = dma.done [#allocation3], 128
        $region48: #{tpu_custom_call.1} parent=43 // pred_fallthru
          _
        %p233 = scmp.lt.s32.totalorder %s21, 1
        %s234 = scalar_select %p233, %s21, 1
        %s235 = smul.addr %s234, 8
        %s236 = scalar_lea.vmem %s0, %s235
        %p237 = pneg %p42
        %p238 = pneg %p39
        %p239 = pneg %p63
        %p240 = pneg %p60
        %p241 = pneg %p84
        %p242 = pneg %p81
        %p243 = pneg %p105
        %p244 = pneg %p102
        %p245 = pneg %p126
        %p246 = pneg %p123
        %p247 = pneg %p147
        %p248 = pneg %p144
        %p249 = pneg %p173
        %p250 = pneg %p170
        %s251 = sand.u32 %s160, 1
        %s252 = scalar_lea.sflag [#allocation4], %s251
        %s253 = sand.u32 %s160, 1
        %s254 = smul.addr %s253, 8
        %s255 = scalar_lea.vmem [#allocation5], %s254
        %p256 = scmp.lt.s32.totalorder %s21, 1
        %s257 = scalar_select %p256, %s21, 1
        %s258 = smul.addr %s257, 8
        %s259 = scalar_lea.vmem %s0, %s258
        %v261 = vld [vmem:[%s259] sm:$0xff]
        %v262 = vld [vmem:[#allocation2] sm:$0xff]
        %v263 = vpack.c.bf16 %v261, %v261
        %v264 = vld [vmem:[%s1] sm:$0xf]
        %v266 = vlaneseq
        %v267 = vshrl.u32 %v266, 7
        %v268 = vsub.s32 0, %v267
        %v269 = vrot.slane %v262, %v268
        %v270 = vlaneseq
        %v271 = vshrl.u32 %v270, 7
        %v272 = vsub.s32 4, %v271
        %v273 = vrot.slane %v262, %v272
        %v276 = vlaneseq
        %v277 = vshrl.u32 %v276, 7
        %v278 = vsub.s32 0, %v277
        %v279 = vrot.slane %v269, %v278
        %v280 = vlaneseq
        %v281 = vshrl.u32 %v280, 7
        %v282 = vsub.s32 0, %v281
        %v283 = vrot.slane %v273, %v282
        %v286 = vunpack.c.l.s4 1983009808
        %v287 = vunpack.c.0.s8 %v286
        %v288 = vlaneseq
        %v289 = vshrl.u32 %v288, 7
        %v290 = vsub.s32 %v287, %v289
        %v291 = vrot.slane %v264, %v290
        %v292 = vcombine.high %v291, %v291
        %vm293 = vcmask 31744
        %v295 = vsel %vm293, %v263, 0
        %vm297 = vcmask 1041408
        %v299 = vsel %vm297, %v291, 0
        %v302 = vsel %vm297, %v292, 0
        %304 = vmatprep.subr.bf16.mxu0 %v302
        %305 = vmatpush1.bf16.msra.mxu0 %v299
        %306 = vmatprep.subr.bf16.mxu0 0
        %307 = vmatpush1.bf16.msra.mxu0 0
        %308 = vmatprep.subr.bf16.mxu0 0
        %309 = vmatpush1.bf16.msra.mxu0 0
        %310 = vmatprep.subr.bf16.mxu0 0
        %311 = vmatpush1.bf16.msra.mxu0 0
        %312 = vmatprep.subr.bf16.mxu0 0
        %313 = vmatpush1.bf16.msra.mxu0 0
        %314 = vmatprep.subr.bf16.mxu0 0
        %315 = vmatpush1.bf16.msra.mxu0 0
        %316 = vmatprep.subr.bf16.mxu0 0
        %317 = vmatpush1.bf16.msra.mxu0 0
        %318 = vmatprep.subr.bf16.mxu0 0
        %319 = vmatpush1.bf16.msra.mxu0 0
        %320 = vmatprep.subr.bf16.mxu0 0
        %321 = vmatpush1.bf16.msra.mxu0 0
        %322 = vmatprep.subr.bf16.mxu0 0
        %323 = vmatpush1.bf16.msra.mxu0 0
        %324 = vmatprep.subr.bf16.mxu0 0
        %325 = vmatpush1.bf16.msra.mxu0 0
        %326 = vmatprep.subr.bf16.mxu0 0
        %327 = vmatpush1.bf16.msra.mxu0 0
        %328 = vmatprep.subr.bf16.mxu0 0
        %329 = vmatpush1.bf16.msra.mxu0 0
        %330 = vmatprep.subr.bf16.mxu0 0
        %331 = vmatpush1.bf16.msra.mxu0 0
        %332 = vmatprep.subr.bf16.mxu0 0
        %333 = vmatpush1.bf16.msra.mxu0 0
        %334 = vmatprep.subr.bf16.mxu0 0
        %335 = vmatpush1.bf16.msra.mxu0 0
        %336 = vmatprep.mubr.bf16.mxu0 0
        %337 = vmatmul.mubr.bf16.gmra.mrb[0].mxu0 %v295
        %v338 = vpop.f32.mrb[0].mxu0
        %v339 = vadd.f32 %v279, %v338
        %v340 = vpop.f32.mrb[0].mxu0
        %v341 = vadd.f32 %v283, %v340
        %v342 = vpop.f32.mrb[0].mxu0
        %v343 = vpop.f32.mrb[0].mxu0
        %344 = vdwg.mxu0
        %v345 = vmax.f32 %v339, 0.0
        %v346 = vmax.f32 %v341, 0.0
        %v347 = vpack.c.bf16 %v345, %v345
        %v348 = vpack.c.bf16 %v346, %v346
        %v349 = vld [vmem:[%s2] sm:$0xff]
        %v350 = vld [vmem:[%s2 + $0x8] sm:$0xff]
        %v351 = vld [vmem:[%s2 + $0x10] sm:$0xff]
        %v352 = vld [vmem:[%s2 + $0x18] sm:$0xff]
        %v353 = vld [vmem:[%s2 + $0x20] sm:$0xff]
        %v354 = vld [vmem:[%s2 + $0x28] sm:$0xff]
        %v355 = vld [vmem:[%s2 + $0x30] sm:$0xff]
        %v356 = vld [vmem:[%s2 + $0x38] sm:$0xff]
        %v357 = vld [vmem:[%s2 + $0x40] sm:$0xff]
        %v358 = vld [vmem:[%s2 + $0x48] sm:$0xff]
        %v359 = vld [vmem:[%s2 + $0x50] sm:$0xff]
        %v360 = vld [vmem:[%s2 + $0x58] sm:$0xff]
        %v361 = vld [vmem:[%s2 + $0x60] sm:$0xff]
        %v362 = vld [vmem:[%s2 + $0x68] sm:$0xff]
        %v363 = vld [vmem:[%s2 + $0x70] sm:$0xff]
        %v364 = vld [vmem:[%s2 + $0x78] sm:$0xff]
        %v365 = vld [vmem:[%s2 + $0x80] sm:$0xff]
        %v366 = vld [vmem:[%s2 + $0x88] sm:$0xff]
        %v367 = vld [vmem:[%s2 + $0x90] sm:$0xff]
        %v368 = vld [vmem:[%s2 + $0x98] sm:$0xff]
        %v369 = vld [vmem:[%s2 + $0xa0] sm:$0xff]
        %v370 = vld [vmem:[%s2 + $0xa8] sm:$0xff]
        %v371 = vld [vmem:[%s2 + $0xb0] sm:$0xff]
        %v372 = vld [vmem:[%s2 + $0xb8] sm:$0xff]
        %v373 = vld [vmem:[%s2 + $0xc0] sm:$0xff]
        %v374 = vld [vmem:[%s2 + $0xc8] sm:$0xff]
        %v375 = vld [vmem:[%s2 + $0xd0] sm:$0xff]
        %v376 = vld [vmem:[%s2 + $0xd8] sm:$0xff]
        %v377 = vld [vmem:[%s2 + $0xe0] sm:$0xff]
        %v378 = vld [vmem:[%s2 + $0xe8] sm:$0xff]
        %v379 = vld [vmem:[%s2 + $0xf0] sm:$0xff]
        %v380 = vld [vmem:[%s2 + $0xf8] sm:$0xff]
        %v381 = vlaneseq
        %v382 = vshrl.u32 %v381, 7
        %v383 = vsub.s32 1, %v382
        %v384 = vrot.slane %v262, %v383
        %v385 = vlaneseq
        %v386 = vshrl.u32 %v385, 7
        %v387 = vsub.s32 5, %v386
        %v388 = vrot.slane %v262, %v387
        %v391 = vlaneseq
        %v392 = vshrl.u32 %v391, 7
        %v393 = vsub.s32 1, %v392
        %v394 = vrot.slane %v384, %v393
        %v395 = vlaneseq
        %v396 = vshrl.u32 %v395, 7
        %v397 = vsub.s32 1, %v396
        %v398 = vrot.slane %v388, %v397
        %v431 = vunpack.c.l.b16 %v349
        %v432 = vunpack.c.h.b16 %v349
        %v433 = vunpack.c.l.b16 %v350
        %v434 = vunpack.c.h.b16 %v350
        %v435 = vunpack.c.l.b16 %v351
        %v436 = vunpack.c.h.b16 %v351
        %v437 = vunpack.c.l.b16 %v352
        %v438 = vunpack.c.h.b16 %v352
        %v439 = vunpack.c.l.b16 %v353
        %v440 = vunpack.c.h.b16 %v353
        %v441 = vunpack.c.l.b16 %v354
        %v442 = vunpack.c.h.b16 %v354
        %v443 = vunpack.c.l.b16 %v355
        %v444 = vunpack.c.h.b16 %v355
        %v445 = vunpack.c.l.b16 %v356
        %v446 = vunpack.c.h.b16 %v356
        %v447 = vunpack.c.l.b16 %v357
        %v448 = vunpack.c.h.b16 %v357
        %v449 = vunpack.c.l.b16 %v358
        %v450 = vunpack.c.h.b16 %v358
        %v451 = vunpack.c.l.b16 %v359
        %v452 = vunpack.c.h.b16 %v359
        %v453 = vunpack.c.l.b16 %v360
        %v454 = vunpack.c.h.b16 %v360
        %v455 = vunpack.c.l.b16 %v361
        %v456 = vunpack.c.h.b16 %v361
        %v457 = vunpack.c.l.b16 %v362
        %v458 = vunpack.c.h.b16 %v362
        %v459 = vunpack.c.l.b16 %v363
        %v460 = vunpack.c.h.b16 %v363
        %v461 = vunpack.c.l.b16 %v364
        %v462 = vunpack.c.h.b16 %v364
        %v463 = vunpack.c.l.b16 %v365
        %v464 = vunpack.c.h.b16 %v365
        %v465 = vunpack.c.l.b16 %v366
        %v466 = vunpack.c.h.b16 %v366
        %v467 = vunpack.c.l.b16 %v367
        %v468 = vunpack.c.h.b16 %v367
        %v469 = vunpack.c.l.b16 %v368
        %v470 = vunpack.c.h.b16 %v368
        %v471 = vunpack.c.l.b16 %v369
        %v472 = vunpack.c.h.b16 %v369
        %v473 = vunpack.c.l.b16 %v370
        %v474 = vunpack.c.h.b16 %v370
        %v475 = vunpack.c.l.b16 %v371
        %v476 = vunpack.c.h.b16 %v371
        %v477 = vunpack.c.l.b16 %v372
        %v478 = vunpack.c.h.b16 %v372
        %v479 = vunpack.c.l.b16 %v373
        %v480 = vunpack.c.h.b16 %v373
        %v481 = vunpack.c.l.b16 %v374
        %v482 = vunpack.c.h.b16 %v374
        %v483 = vunpack.c.l.b16 %v375
        %v484 = vunpack.c.h.b16 %v375
        %v485 = vunpack.c.l.b16 %v376
        %v486 = vunpack.c.h.b16 %v376
        %v487 = vunpack.c.l.b16 %v377
        %v488 = vunpack.c.h.b16 %v377
        %v489 = vunpack.c.l.b16 %v378
        %v490 = vunpack.c.h.b16 %v378
        %v491 = vunpack.c.l.b16 %v379
        %v492 = vunpack.c.h.b16 %v379
        %v493 = vunpack.c.l.b16 %v380
        %v494 = vunpack.c.h.b16 %v380
        %v495 = vpack.c.b16 %v433, %v431
        %v496 = vpack.c.b16 %v434, %v432
        %v497 = vpack.c.b16 %v437, %v435
        %v498 = vpack.c.b16 %v438, %v436
        %v499 = vpack.c.b16 %v441, %v439
        %v500 = vpack.c.b16 %v442, %v440
        %v501 = vpack.c.b16 %v445, %v443
        %v502 = vpack.c.b16 %v446, %v444
        %v503 = vpack.c.b16 %v449, %v447
        %v504 = vpack.c.b16 %v450, %v448
        %v505 = vpack.c.b16 %v453, %v451
        %v506 = vpack.c.b16 %v454, %v452
        %v507 = vpack.c.b16 %v457, %v455
        %v508 = vpack.c.b16 %v458, %v456
        %v509 = vpack.c.b16 %v461, %v459
        %v510 = vpack.c.b16 %v462, %v460
        %v511 = vpack.c.b16 %v465, %v463
        %v512 = vpack.c.b16 %v466, %v464
        %v513 = vpack.c.b16 %v469, %v467
        %v514 = vpack.c.b16 %v470, %v468
        %v515 = vpack.c.b16 %v473, %v471
        %v516 = vpack.c.b16 %v474, %v472
        %v517 = vpack.c.b16 %v477, %v475
        %v518 = vpack.c.b16 %v478, %v476
        %v519 = vpack.c.b16 %v481, %v479
        %v520 = vpack.c.b16 %v482, %v480
        %v521 = vpack.c.b16 %v485, %v483
        %v522 = vpack.c.b16 %v486, %v484
        %v523 = vpack.c.b16 %v489, %v487
        %v524 = vpack.c.b16 %v490, %v488
        %v525 = vpack.c.b16 %v493, %v491
        %v526 = vpack.c.b16 %v494, %v492
        %559 = vmatprep.subr.bf16.mxu0 %v496
        %560 = vmatpush1.bf16.msra.mxu0 %v495
        %561 = vmatprep.subr.bf16.mxu0 %v498
        %562 = vmatpush1.bf16.msra.mxu0 %v497
        %563 = vmatprep.subr.bf16.mxu0 %v500
        %564 = vmatpush1.bf16.msra.mxu0 %v499
        %565 = vmatprep.subr.bf16.mxu0 %v502
        %566 = vmatpush1.bf16.msra.mxu0 %v501
        %567 = vmatprep.subr.bf16.mxu0 %v504
        %568 = vmatpush1.bf16.msra.mxu0 %v503
        %569 = vmatprep.subr.bf16.mxu0 %v506
        %570 = vmatpush1.bf16.msra.mxu0 %v505
        %571 = vmatprep.subr.bf16.mxu0 %v508
        %572 = vmatpush1.bf16.msra.mxu0 %v507
        %573 = vmatprep.subr.bf16.mxu0 %v510
        %574 = vmatpush1.bf16.msra.mxu0 %v509
        %575 = vmatprep.subr.bf16.mxu0 %v512
        %576 = vmatpush1.bf16.msra.mxu0 %v511
        %577 = vmatprep.subr.bf16.mxu0 %v514
        %578 = vmatpush1.bf16.msra.mxu0 %v513
        %579 = vmatprep.subr.bf16.mxu0 %v516
        %580 = vmatpush1.bf16.msra.mxu0 %v515
        %581 = vmatprep.subr.bf16.mxu0 %v518
        %582 = vmatpush1.bf16.msra.mxu0 %v517
        %583 = vmatprep.subr.bf16.mxu0 %v520
        %584 = vmatpush1.bf16.msra.mxu0 %v519
        %585 = vmatprep.subr.bf16.mxu0 %v522
        %586 = vmatpush1.bf16.msra.mxu0 %v521
        %587 = vmatprep.subr.bf16.mxu0 %v524
        %588 = vmatpush1.bf16.msra.mxu0 %v523
        %589 = vmatprep.subr.bf16.mxu0 %v526
        %590 = vmatpush1.bf16.msra.mxu0 %v525
        %591 = vmatprep.mubr.bf16.mxu0 %v348
        %592 = vmatmul.mubr.bf16.gmra.mrb[0].mxu0 %v347
        %v593 = vpop.f32.mrb[0].mxu0
        %v594 = vadd.f32 %v394, %v593
        %v595 = vpop.f32.mrb[0].mxu0
        %v596 = vadd.f32 %v398, %v595
        %v597 = vpop.f32.mrb[0].mxu0
        %v598 = vpop.f32.mrb[0].mxu0
        %599 = vdwg.mxu0
        %v600 = vmax.f32 %v594, 0.0
        %v601 = vmax.f32 %v596, 0.0
        %v602 = vpack.c.bf16 %v600, %v600
        %v603 = vpack.c.bf16 %v601, %v601
        %v604 = vld [vmem:[%s3] sm:$0xf]
        %v605 = vld [vmem:[%s3 + $0x4] sm:$0xf]
        %v606 = vld [vmem:[%s3 + $0x8] sm:$0xf]
        %v607 = vld [vmem:[%s3 + $0xc] sm:$0xf]
        %v608 = vld [vmem:[%s3 + $0x10] sm:$0xf]
        %v609 = vld [vmem:[%s3 + $0x14] sm:$0xf]
        %v610 = vld [vmem:[%s3 + $0x18] sm:$0xf]
        %v611 = vld [vmem:[%s3 + $0x1c] sm:$0xf]
        %v612 = vld [vmem:[%s3 + $0x20] sm:$0xf]
        %v613 = vld [vmem:[%s3 + $0x24] sm:$0xf]
        %v614 = vld [vmem:[%s3 + $0x28] sm:$0xf]
        %v615 = vld [vmem:[%s3 + $0x2c] sm:$0xf]
        %v616 = vld [vmem:[%s3 + $0x30] sm:$0xf]
        %v617 = vld [vmem:[%s3 + $0x34] sm:$0xf]
        %v618 = vld [vmem:[%s3 + $0x38] sm:$0xf]
        %v619 = vld [vmem:[%s3 + $0x3c] sm:$0xf]
        %v620 = vld [vmem:[%s3 + $0x40] sm:$0xf]
        %v621 = vld [vmem:[%s3 + $0x44] sm:$0xf]
        %v622 = vld [vmem:[%s3 + $0x48] sm:$0xf]
        %v623 = vld [vmem:[%s3 + $0x4c] sm:$0xf]
        %v624 = vld [vmem:[%s3 + $0x50] sm:$0xf]
        %v625 = vld [vmem:[%s3 + $0x54] sm:$0xf]
        %v626 = vld [vmem:[%s3 + $0x58] sm:$0xf]
        %v627 = vld [vmem:[%s3 + $0x5c] sm:$0xf]
        %v628 = vld [vmem:[%s3 + $0x60] sm:$0xf]
        %v629 = vld [vmem:[%s3 + $0x64] sm:$0xf]
        %v630 = vld [vmem:[%s3 + $0x68] sm:$0xf]
        %v631 = vld [vmem:[%s3 + $0x6c] sm:$0xf]
        %v632 = vld [vmem:[%s3 + $0x70] sm:$0xf]
        %v633 = vld [vmem:[%s3 + $0x74] sm:$0xf]
        %v634 = vld [vmem:[%s3 + $0x78] sm:$0xf]
        %v635 = vld [vmem:[%s3 + $0x7c] sm:$0xf]
        %v636 = vlaneseq
        %v637 = vshrl.u32 %v636, 7
        %v638 = vsub.s32 2, %v637
        %v639 = vrot.slane %v262, %v638
        %v672 = vunpack.c.l.b16 %v604
        %v673 = vunpack.c.l.b16 %v605
        %v674 = vunpack.c.l.b16 %v606
        %v675 = vunpack.c.l.b16 %v607
        %v676 = vunpack.c.l.b16 %v608
        %v677 = vunpack.c.l.b16 %v609
        %v678 = vunpack.c.l.b16 %v610
        %v679 = vunpack.c.l.b16 %v611
        %v680 = vunpack.c.l.b16 %v612
        %v681 = vunpack.c.l.b16 %v613
        %v682 = vunpack.c.l.b16 %v614
        %v683 = vunpack.c.l.b16 %v615
        %v684 = vunpack.c.l.b16 %v616
        %v685 = vunpack.c.l.b16 %v617
        %v686 = vunpack.c.l.b16 %v618
        %v687 = vunpack.c.l.b16 %v619
        %v688 = vunpack.c.l.b16 %v620
        %v689 = vunpack.c.l.b16 %v621
        %v690 = vunpack.c.l.b16 %v622
        %v691 = vunpack.c.l.b16 %v623
        %v692 = vunpack.c.l.b16 %v624
        %v693 = vunpack.c.l.b16 %v625
        %v694 = vunpack.c.l.b16 %v626
        %v695 = vunpack.c.l.b16 %v627
        %v696 = vunpack.c.l.b16 %v628
        %v697 = vunpack.c.l.b16 %v629
        %v698 = vunpack.c.l.b16 %v630
        %v699 = vunpack.c.l.b16 %v631
        %v700 = vunpack.c.l.b16 %v632
        %v701 = vunpack.c.l.b16 %v633
        %v702 = vunpack.c.l.b16 %v634
        %v703 = vunpack.c.l.b16 %v635
        %v704 = vpack.c.b16 %v673, %v672
        %v705 = vpack.c.b16 %v675, %v674
        %v706 = vpack.c.b16 %v677, %v676
        %v707 = vpack.c.b16 %v679, %v678
        %v708 = vpack.c.b16 %v681, %v680
        %v709 = vpack.c.b16 %v683, %v682
        %v710 = vpack.c.b16 %v685, %v684
        %v711 = vpack.c.b16 %v687, %v686
        %v712 = vpack.c.b16 %v689, %v688
        %v713 = vpack.c.b16 %v691, %v690
        %v714 = vpack.c.b16 %v693, %v692
        %v715 = vpack.c.b16 %v695, %v694
        %v716 = vpack.c.b16 %v697, %v696
        %v717 = vpack.c.b16 %v699, %v698
        %v718 = vpack.c.b16 %v701, %v700
        %v719 = vpack.c.b16 %v703, %v702
        %736 = vmatprep.subr.bf16.mxu0 0
        %737 = vmatpush1.bf16.msra.mxu0 %v704
        %738 = vmatprep.subr.bf16.mxu0 0
        %739 = vmatpush1.bf16.msra.mxu0 %v705
        %740 = vmatprep.subr.bf16.mxu0 0
        %741 = vmatpush1.bf16.msra.mxu0 %v706
        %742 = vmatprep.subr.bf16.mxu0 0
        %743 = vmatpush1.bf16.msra.mxu0 %v707
        %744 = vmatprep.subr.bf16.mxu0 0
        %745 = vmatpush1.bf16.msra.mxu0 %v708
        %746 = vmatprep.subr.bf16.mxu0 0
        %747 = vmatpush1.bf16.msra.mxu0 %v709
        %748 = vmatprep.subr.bf16.mxu0 0
        %749 = vmatpush1.bf16.msra.mxu0 %v710
        %750 = vmatprep.subr.bf16.mxu0 0
        %751 = vmatpush1.bf16.msra.mxu0 %v711
        %752 = vmatprep.subr.bf16.mxu0 0
        %753 = vmatpush1.bf16.msra.mxu0 %v712
        %754 = vmatprep.subr.bf16.mxu0 0
        %755 = vmatpush1.bf16.msra.mxu0 %v713
        %756 = vmatprep.subr.bf16.mxu0 0
        %757 = vmatpush1.bf16.msra.mxu0 %v714
        %758 = vmatprep.subr.bf16.mxu0 0
        %759 = vmatpush1.bf16.msra.mxu0 %v715
        %760 = vmatprep.subr.bf16.mxu0 0
        %761 = vmatpush1.bf16.msra.mxu0 %v716
        %762 = vmatprep.subr.bf16.mxu0 0
        %763 = vmatpush1.bf16.msra.mxu0 %v717
        %764 = vmatprep.subr.bf16.mxu0 0
        %765 = vmatpush1.bf16.msra.mxu0 %v718
        %766 = vmatprep.subr.bf16.mxu0 0
        %767 = vmatpush1.bf16.msra.mxu0 %v719
        %768 = vmatprep.mubr.bf16.mxu0 %v603
        %769 = vmatmul.mubr.bf16.gmra.mrb[0].mxu0 %v602
        %v770 = vpop.f32.mrb[0].mxu0
        %v771 = vadd.f32 %v639, %v770
        %v772 = vpop.f32.mrb[0].mxu0
        %v773 = vpop.f32.mrb[0].mxu0
        %v774 = vpop.f32.mrb[0].mxu0
        %775 = vdwg.mxu0
        %v776 = vmul.f32 %v771, %v771
        %778 = vrot.lane.b32.xlu0 %v776, 110
        %v779 = vpop.permute.xlu0 %778
        %v781 = vsel %vm293, %v779, 0.0
        %782 = vadd.xlane.f32.xlu0 %v781
        %v783 = vpop.xlane.xlu0 %782
        %v784 = vmul.f32 %v261, %v261
        %v785 = vsel %vm293, %v784, 0.0
        %786 = vadd.xlane.f32.xlu0 %v785
        %v787 = vpop.xlane.xlu0 %786
        %v788 = vmul.f32 %v787, 0.1
        %v789 = vadd.f32 %v783, %v788
        %v790 = vld [vmem:[%s5] sm:$0xff]
        %v791 = vld [vmem:[%s5 + $0x8] sm:$0xff]
        %v792 = vld [vmem:[%s5 + $0x10] sm:$0xff]
        %v793 = vld [vmem:[%s5 + $0x18] sm:$0xff]
        %v794 = vld [vmem:[%s5 + $0x20] sm:$0xff]
        %v795 = vld [vmem:[%s5 + $0x28] sm:$0xff]
        %v796 = vld [vmem:[%s5 + $0x30] sm:$0xff]
        %v797 = vld [vmem:[%s5 + $0x38] sm:$0xff]
        %v798 = vld [vmem:[%s5 + $0x40] sm:$0xff]
        %v799 = vld [vmem:[%s5 + $0x48] sm:$0xff]
        %v800 = vld [vmem:[%s5 + $0x50] sm:$0xff]
        %v801 = vld [vmem:[%s5 + $0x58] sm:$0xff]
        %v802 = vlaneseq
        %v803 = vshrl.u32 %v802, 7
        %v804 = vsub.s32 3, %v803
        %v805 = vrot.slane %v262, %v804
        %807 = vrot.lane.b32.xlu0 %v600, 64
        %v808 = vpop.permute.xlu0 %807
        %vm809 = vcmask 261120
        %v810 = vsel %vm809, %v808, 0
        %812 = vmatprep.subr.mxu0 0.0
        %813 = vmatpush1.msra.mxu0 %v790
        %814 = vmatprep.subr.mxu0 0.0
        %815 = vmatpush1.msra.mxu0 %v791
        %816 = vmatprep.subr.mxu0 0.0
        %817 = vmatpush1.msra.mxu0 %v792
        %818 = vmatprep.subr.mxu0 0.0
        %819 = vmatpush1.msra.mxu0 %v793
        %820 = vmatprep.subr.mxu0 0.0
        %821 = vmatpush1.msra.mxu0 0.0
        %822 = vmatprep.subr.mxu0 0.0
        %823 = vmatpush1.msra.mxu0 0.0
        %824 = vmatprep.subr.mxu0 0.0
        %825 = vmatpush1.msra.mxu0 0.0
        %826 = vmatprep.subr.mxu0 0.0
        %827 = vmatpush1.msra.mxu0 0.0
        %828 = vmatprep.subr.mxu0 0.0
        %829 = vmatpush1.msra.mxu0 0.0
        %830 = vmatprep.subr.mxu0 0.0
        %831 = vmatpush1.msra.mxu0 0.0
        %832 = vmatprep.subr.mxu0 0.0
        %833 = vmatpush1.msra.mxu0 0.0
        %834 = vmatprep.subr.mxu0 0.0
        %835 = vmatpush1.msra.mxu0 0.0
        %836 = vmatprep.subr.mxu0 0.0
        %837 = vmatpush1.msra.mxu0 0.0
        %838 = vmatprep.subr.mxu0 0.0
        %839 = vmatpush1.msra.mxu0 0.0
        %840 = vmatprep.subr.mxu0 0.0
        %841 = vmatpush1.msra.mxu0 0.0
        %842 = vmatprep.subr.mxu0 0.0
        %843 = vmatpush1.msra.mxu0 0.0
        %844 = vmatprep.subr.mxu0 0.0
        %845 = vmatpush1.msra.mxu0 0.0
        %846 = vmatprep.subr.mxu0 0.0
        %847 = vmatpush1.msra.mxu0 0.0
        %848 = vmatprep.subr.mxu0 0.0
        %849 = vmatpush1.msra.mxu0 0.0
        %850 = vmatprep.subr.mxu0 0.0
        %851 = vmatpush1.msra.mxu0 0.0
        %852 = vmatprep.subr.mxu0 0.0
        %853 = vmatpush1.msra.mxu0 0.0
        %854 = vmatprep.subr.mxu0 0.0
        %855 = vmatpush1.msra.mxu0 0.0
        %856 = vmatprep.subr.mxu0 0.0
        %857 = vmatpush1.msra.mxu0 0.0
        %858 = vmatprep.subr.mxu0 0.0
        %859 = vmatpush1.msra.mxu0 0.0
        %860 = vmatprep.subr.mxu0 0.0
        %861 = vmatpush1.msra.mxu0 0.0
        %862 = vmatprep.subr.mxu0 0.0
        %863 = vmatpush1.msra.mxu0 0.0
        %864 = vmatprep.subr.mxu0 0.0
        %865 = vmatpush1.msra.mxu0 0.0
        %866 = vmatprep.subr.mxu0 0.0
        %867 = vmatpush1.msra.mxu0 0.0
        %868 = vmatprep.subr.mxu0 0.0
        %869 = vmatpush1.msra.mxu0 0.0
        %870 = vmatprep.subr.mxu0 0.0
        %871 = vmatpush1.msra.mxu0 0.0
        %872 = vmatprep.subr.mxu0 0.0
        %873 = vmatpush1.msra.mxu0 0.0
        %874 = vmatprep.subr.mxu0 0.0
        %875 = vmatpush1.msra.mxu0 0.0
        %876 = vmatprep.mubr.f32.mxu0 0.0
        %877 = vmatmul.mubr.f32.gmra.mrb[0].mxu0 %v810
        %v878 = vpop.f32.mrb[0].mxu0
        %v879 = vadd.f32 %v805, %v878
        %v880 = vpop.f32.mrb[0].mxu0
        %881 = vdwg.mxu0
        %vm882 = vcmp.gt.f32.partialorder %v594, 0.0
        %884 = vrot.lane.b32.xlu0 %v879, 64
        %v885 = vpop.permute.xlu0 %884
        %v887 = vsel %vm882, %v885, 0.0
        %889 = vrot.lane.b32.xlu0 %v887, 64
        %v890 = vpop.permute.xlu0 %889
        %v891 = vsel %vm809, %v890, 0
        %893 = vmatprep.subr.mxu0 0.0
        %894 = vmatpush1.msra.mxu0 %v794
        %895 = vmatprep.subr.mxu0 0.0
        %896 = vmatpush1.msra.mxu0 %v795
        %897 = vmatprep.subr.mxu0 0.0
        %898 = vmatpush1.msra.mxu0 %v796
        %899 = vmatprep.subr.mxu0 0.0
        %900 = vmatpush1.msra.mxu0 %v797
        %901 = vmatprep.subr.mxu0 0.0
        %902 = vmatpush1.msra.mxu0 0.0
        %903 = vmatprep.subr.mxu0 0.0
        %904 = vmatpush1.msra.mxu0 0.0
        %905 = vmatprep.subr.mxu0 0.0
        %906 = vmatpush1.msra.mxu0 0.0
        %907 = vmatprep.subr.mxu0 0.0
        %908 = vmatpush1.msra.mxu0 0.0
        %909 = vmatprep.subr.mxu0 0.0
        %910 = vmatpush1.msra.mxu0 0.0
        %911 = vmatprep.subr.mxu0 0.0
        %912 = vmatpush1.msra.mxu0 0.0
        %913 = vmatprep.subr.mxu0 0.0
        %914 = vmatpush1.msra.mxu0 0.0
        %915 = vmatprep.subr.mxu0 0.0
        %916 = vmatpush1.msra.mxu0 0.0
        %917 = vmatprep.subr.mxu0 0.0
        %918 = vmatpush1.msra.mxu0 0.0
        %919 = vmatprep.subr.mxu0 0.0
        %920 = vmatpush1.msra.mxu0 0.0
        %921 = vmatprep.subr.mxu0 0.0
        %922 = vmatpush1.msra.mxu0 0.0
        %923 = vmatprep.subr.mxu0 0.0
        %924 = vmatpush1.msra.mxu0 0.0
        %925 = vmatprep.subr.mxu0 0.0
        %926 = vmatpush1.msra.mxu0 0.0
        %927 = vmatprep.subr.mxu0 0.0
        %928 = vmatpush1.msra.mxu0 0.0
        %929 = vmatprep.subr.mxu0 0.0
        %930 = vmatpush1.msra.mxu0 0.0
        %931 = vmatprep.subr.mxu0 0.0
        %932 = vmatpush1.msra.mxu0 0.0
        %933 = vmatprep.subr.mxu0 0.0
        %934 = vmatpush1.msra.mxu0 0.0
        %935 = vmatprep.subr.mxu0 0.0
        %936 = vmatpush1.msra.mxu0 0.0
        %937 = vmatprep.subr.mxu0 0.0
        %938 = vmatpush1.msra.mxu0 0.0
        %939 = vmatprep.subr.mxu0 0.0
        %940 = vmatpush1.msra.mxu0 0.0
        %941 = vmatprep.subr.mxu0 0.0
        %942 = vmatpush1.msra.mxu0 0.0
        %943 = vmatprep.subr.mxu0 0.0
        %944 = vmatpush1.msra.mxu0 0.0
        %945 = vmatprep.subr.mxu0 0.0
        %946 = vmatpush1.msra.mxu0 0.0
        %947 = vmatprep.subr.mxu0 0.0
        %948 = vmatpush1.msra.mxu0 0.0
        %949 = vmatprep.subr.mxu0 0.0
        %950 = vmatpush1.msra.mxu0 0.0
        %951 = vmatprep.subr.mxu0 0.0
        %952 = vmatpush1.msra.mxu0 0.0
        %953 = vmatprep.subr.mxu0 0.0
        %954 = vmatpush1.msra.mxu0 0.0
        %955 = vmatprep.subr.mxu0 0.0
        %956 = vmatpush1.msra.mxu0 0.0
        %957 = vmatprep.mubr.f32.mxu0 0.0
        %958 = vmatmul.mubr.f32.gmra.mrb[0].mxu0 %v891
        %v959 = vpop.f32.mrb[0].mxu0
        %v960 = vadd.f32 0.0, %v959
        %v961 = vpop.f32.mrb[0].mxu0
        %962 = vdwg.mxu0
        %vm963 = vcmp.gt.f32.partialorder %v339, 0.0
        %965 = vrot.lane.b32.xlu0 %v960, 64
        %v966 = vpop.permute.xlu0 %965
        %v968 = vsel %vm963, %v966, 0.0
        %v969 = vmul.f32 %v261, 0.2
        %971 = vrot.lane.b32.xlu0 %v968, 64
        %v972 = vpop.permute.xlu0 %971
        %v973 = vsel %vm809, %v972, 0
        %975 = vmatprep.subr.mxu0 0.0
        %976 = vmatpush1.msra.mxu0 %v798
        %977 = vmatprep.subr.mxu0 0.0
        %978 = vmatpush1.msra.mxu0 %v799
        %979 = vmatprep.subr.mxu0 0.0
        %980 = vmatpush1.msra.mxu0 %v800
        %981 = vmatprep.subr.mxu0 0.0
        %982 = vmatpush1.msra.mxu0 %v801
        %983 = vmatprep.subr.mxu0 0.0
        %984 = vmatpush1.msra.mxu0 0.0
        %985 = vmatprep.subr.mxu0 0.0
        %986 = vmatpush1.msra.mxu0 0.0
        %987 = vmatprep.subr.mxu0 0.0
        %988 = vmatpush1.msra.mxu0 0.0
        %989 = vmatprep.subr.mxu0 0.0
        %990 = vmatpush1.msra.mxu0 0.0
        %991 = vmatprep.subr.mxu0 0.0
        %992 = vmatpush1.msra.mxu0 0.0
        %993 = vmatprep.subr.mxu0 0.0
        %994 = vmatpush1.msra.mxu0 0.0
        %995 = vmatprep.subr.mxu0 0.0
        %996 = vmatpush1.msra.mxu0 0.0
        %997 = vmatprep.subr.mxu0 0.0
        %998 = vmatpush1.msra.mxu0 0.0
        %999 = vmatprep.subr.mxu0 0.0
        %1000 = vmatpush1.msra.mxu0 0.0
        %1001 = vmatprep.subr.mxu0 0.0
        %1002 = vmatpush1.msra.mxu0 0.0
        %1003 = vmatprep.subr.mxu0 0.0
        %1004 = vmatpush1.msra.mxu0 0.0
        %1005 = vmatprep.subr.mxu0 0.0
        %1006 = vmatpush1.msra.mxu0 0.0
        %1007 = vmatprep.subr.mxu0 0.0
        %1008 = vmatpush1.msra.mxu0 0.0
        %1009 = vmatprep.subr.mxu0 0.0
        %1010 = vmatpush1.msra.mxu0 0.0
        %1011 = vmatprep.subr.mxu0 0.0
        %1012 = vmatpush1.msra.mxu0 0.0
        %1013 = vmatprep.subr.mxu0 0.0
        %1014 = vmatpush1.msra.mxu0 0.0
        %1015 = vmatprep.subr.mxu0 0.0
        %1016 = vmatpush1.msra.mxu0 0.0
        %1017 = vmatprep.subr.mxu0 0.0
        %1018 = vmatpush1.msra.mxu0 0.0
        %1019 = vmatprep.subr.mxu0 0.0
        %1020 = vmatpush1.msra.mxu0 0.0
        %1021 = vmatprep.subr.mxu0 0.0
        %1022 = vmatpush1.msra.mxu0 0.0
        %1023 = vmatprep.subr.mxu0 0.0
        %1024 = vmatpush1.msra.mxu0 0.0
        %1025 = vmatprep.subr.mxu0 0.0
        %1026 = vmatpush1.msra.mxu0 0.0
        %1027 = vmatprep.subr.mxu0 0.0
        %1028 = vmatpush1.msra.mxu0 0.0
        %1029 = vmatprep.subr.mxu0 0.0
        %1030 = vmatpush1.msra.mxu0 0.0
        %1031 = vmatprep.subr.mxu0 0.0
        %1032 = vmatpush1.msra.mxu0 0.0
        %1033 = vmatprep.subr.mxu0 0.0
        %1034 = vmatpush1.msra.mxu0 0.0
        %1035 = vmatprep.subr.mxu0 0.0
        %1036 = vmatpush1.msra.mxu0 0.0
        %1037 = vmatprep.subr.mxu0 0.0
        %1038 = vmatpush1.msra.mxu0 0.0
        %1039 = vmatprep.mubr.f32.mxu0 0.0
        %1040 = vmatmul.mubr.f32.gmra.mrb[0].mxu0 %v973
        %v1041 = vpop.f32.mrb[0].mxu0
        %v1042 = vadd.f32 %v969, %v1041
        %v1043 = vpop.f32.mrb[0].mxu0
        %1044 = vdwg.mxu0
        %1046 = vset.pattern.permute.xlu0 8
        %1047 = vperm.xlu0 %1046, %v771
        %v1048 = vpop.permute.xlu0 %1047
        %v1050 = vmul.f32 %v771, %v1048
        %1051 = vset.pattern.permute.xlu0 9
        %1052 = vperm.xlu0 %1051, %v771
        %v1053 = vpop.permute.xlu0 %1052
        %v1055 = vmul.f32 %v771, %v1053
        %1057 = vrot.lane.b32.xlu0 %v1055, 124
        %v1058 = vpop.permute.xlu0 %1057
        %v1060 = vadd.f32 %v1050, %v1058
        %1062 = vrot.lane.b32.xlu0 %v1042, 127
        %v1063 = vpop.permute.xlu0 %1062
        %v1065 = vadd.f32 %v784, %v1063
        %1067 = vrot.lane.b32.xlu0 %v1060, 14
        %v1068 = vpop.permute.xlu0 %1067
        %v1070 = vadd.f32 %v771, %v1068
        %1072 = vrot.lane.b32.xlu0 %v1070, 114
        %v1073 = vpop.permute.xlu0 %1072
        %v1075 = vmul.f32 %v1042, %v1073
        %v1076 = vsel %vm293, %v1075, 0.0
        %1077 = vadd.xlane.f32.xlu0 %v1076
        %v1078 = vpop.xlane.xlu0 %1077
        %v1079 = vadd.f32 %v1078, %v1065
        %v1080 = vmul.f32 %v1042, %v1042
        %v1081 = vsel %vm293, %v1080, 0.0
        %1082 = vadd.xlane.f32.xlu0 %v1081
        %v1083 = vpop.xlane.xlu0 %1082
        %v1084 = vadd.f32 %v1083, 0.0001
        %v1085 = vrcp.pop %v1084
        %v1086 = vmul.f32 %v1079, %v1085
        %v1087 = vmax.f32 %v1086, 0.0
        %1089 = vset.pattern.permute.xlu0 0
        %1090 = vperm.xlu0 %1089, %v1087
        %v1091 = vpop.permute.xlu0 %1090
        %v1093 = vmul.f32 %v1091, %v1042
        %1095 = vrot.lane.b32.xlu0 %v1093, 14
        %v1096 = vpop.permute.xlu0 %1095
        %v1098 = vsub.f32 %v771, %v1096
        %v1099 = vmul.f32 %v1042, %v771
        %v1100 = vsel %vm293, %v1099, 0.0
        %1101 = vadd.xlane.f32.xlu0 %v1100
        %v1102 = vpop.xlane.xlu0 %1101
        %1103 = vrot.lane.b32.xlu0 %v771, 124
        %v1104 = vpop.permute.xlu0 %1103
        %v1106 = vmul.f32 %v1042, %v1104
        %v1107 = vsel %vm293, %v1106, 0.0
        %1108 = vadd.xlane.f32.xlu0 %v1107
        %v1109 = vpop.xlane.xlu0 %1108
        %v1110 = vmul.f32 %v1102, %v771
        %v1111 = vmul.f32 %v1109, %v771
        %1113 = vrot.lane.b32.xlu0 %v1111, 127
        %v1114 = vpop.permute.xlu0 %1113
        %v1116 = vadd.f32 %v1110, %v1114
        %1118 = vrot.lane.b32.xlu0 %v1116, 118
        %v1119 = vpop.permute.xlu0 %1118
        %1121 = vrot.lane.b32.xlu0 %v1116, 117
        %v1122 = vpop.permute.xlu0 %1121
        %vm1124 = vcmask 7168
        %v1125 = vsel %vm1124, %v1119, %v1122
        %1127 = vrot.lane.b32.xlu0 %v1125, 19
        %v1128 = vpop.permute.xlu0 %1127
        %vm1130 = vcmask 113664
        %v1131 = vsel %vm1130, %v771, %v1098
        %vm1132 = vcmask 146432
        %v1133 = vsel %vm1132, %v1131, %v789
        %vm1134 = vcmask 154624
        %v1135 = vsel %vm1134, %v1133, %v1128
        %vm1136 = vcmask 171008
        %v1137 = vsel %vm1136, %v1135, 0.0
        %1138 = vst [vmem:[%s255] sm:$0xff] %v1137
        %s1139 = sand.u32 %s160, 1
        %s1140 = scalar_lea.sflag [#allocation4], %s1139
        %s1141 = sand.u32 %s160, 1
        %s1142 = smul.addr %s1141, 8
        %s1143 = scalar_lea.vmem [#allocation5], %s1142
        // Predicated region
        $region49: #{tpu_custom_call.1} parent=43 // pred_check
          %p1144 = pneg %p170
        $region50: #{tpu_custom_call.1} parent=43 // pred_check_branch
          %1146 = sbr.rel (%p1144) target = $region52
        $region51: #{tpu_custom_call.1} parent=43 // pred_region
          %s1148 = ssub.s32 128, 128
          %1149 = vsyncadd %s1140, %s1148
          %s1150 = smul.addr %s21, 128
          %s1151 = scalar_lea.hbm %s6, %s1150
          %s1153 = sshll.u32 %s1143, 4
          %s1154 = int_to_ptr.vmem [resolvable:$true] %s1153
          %1156 = dma.vmem_to_hbm [thread:$0]  %s1154, 128, %s1151, %s1140
        $region52: #{tpu_custom_call.1} parent=43 // pred_fallthru
          _
      $region44: #{tpu_custom_call.1} parent=5 // pred_fallthru
        _
      %p1157 = scmp.le.s32.totalorder 2, %s16
      // Predicated region
      $region53: #{tpu_custom_call.1} parent=5 // pred_check
        %p1158 = pneg %p1157
      $region54: #{tpu_custom_call.1} parent=5 // pred_check_branch
        %1160 = sbr.rel (%p1158) target = $region56
      $region55: #{tpu_custom_call.1} parent=5 // pred_region
        %s1161 = ssub.s32 %s16, 2
        // Predicated region
        $region57: #{tpu_custom_call.1} parent=55 // pred_check
          %p1162 = pneg %p176
        $region58: #{tpu_custom_call.1} parent=55 // pred_check_branch
          %1164 = sbr.rel (%p1162) target = $region60
        $region59: #{tpu_custom_call.1} parent=55 // pred_region
          %s1165 = sand.u32 %s161, 1
          %s1166 = scalar_lea.sflag [#allocation4], %s1165
          %s1167 = sand.u32 %s161, 1
          %s1168 = smul.addr %s1167, 8
          %s1169 = scalar_lea.vmem [#allocation5], %s1168
          %1170 = dma.done %s1166, 128
        $region60: #{tpu_custom_call.1} parent=55 // pred_fallthru
          _
      $region56: #{tpu_custom_call.1} parent=5 // pred_fallthru
        _
    $region6: #{tpu_custom_call.1} parent=1 // loop_footer
      %s20 = sadd.s32 1, %s16
    $region7: #{tpu_custom_call.1} parent=1 // loop_footer_branch
      %15 = sbr.rel target = $region3
    $region8: #{tpu_custom_call.1} parent=1 // loop_exit
      _
    %1171 = vsyncpa [#allocation3], 1
    %s1172 = scalar_lea.sflag [#allocation3], 1
    %1173 = vsyncpa %s1172, 1
    %1174 = vsyncpa [#allocation4], 1
    %s1175 = scalar_lea.sflag [#allocation4], 1
    %1176 = vsyncpa %s1175, 1

</llo_original>
